<compile_context>
chip_gen: v6e
topology: v6e:2x2x1
jax: 0.10.0
libtpu: 0.0.40
codegen_flags: <defaults>
</compile_context>

<pallas_src>
import math

import jax
import jax.numpy as jnp
from jax import lax
from jax.experimental import pallas as pl
from jax.experimental.pallas import tpu as pltpu


# ----------------------------------------------------------------------------
# Generic dense (Linear) kernel: out = x @ w + b, tiled over rows.
# ----------------------------------------------------------------------------
def _dense_kernel(x_ref, w_ref, b_ref, o_ref):
    o_ref[...] = (
        jnp.dot(x_ref[...], w_ref[...], preferred_element_type=jnp.float32)
        + b_ref[...]
    )


def _choose_row_tile(M, tile_m):
    if M <= tile_m:
        return M, M
    tm = tile_m                      # multiple of 8 by construction
    Mp = pl.cdiv(M, tm) * tm
    return tm, Mp


def dense(x, w, b, *, tile_m=512):
    M, K = x.shape
    K2, N = w.shape
    assert K == K2
    tm, Mp = _choose_row_tile(M, tile_m)
    xp = x if Mp == M else jnp.pad(x, ((0, Mp - M), (0, 0)))
    out = pl.pallas_call(
        _dense_kernel,
        out_shape=jax.ShapeDtypeStruct((Mp, N), jnp.float32),
        grid=(Mp // tm,),
        in_specs=[
            pl.BlockSpec((tm, K), lambda i: (i, 0)),
            pl.BlockSpec((K, N), lambda i: (0, 0)),
            pl.BlockSpec((1, N), lambda i: (0, 0)),
        ],
        out_specs=pl.BlockSpec((tm, N), lambda i: (i, 0)),
        compiler_params=pltpu.CompilerParams(dimension_semantics=("parallel",)),
    )(xp, w, b.reshape(1, N))
    return out if Mp == M else out[:M]


# ----------------------------------------------------------------------------
# Fused two-layer dense: out = (x @ w1 + b1) @ w2 + b2  (nonlin_map + temporal proj)
# Keeps the lane-sparse (M, 16) intermediate in VMEM instead of HBM.
# ----------------------------------------------------------------------------
def _double_dense_kernel(x_ref, w1_ref, b1_ref, w2_ref, b2_ref, o_ref):
    h = jnp.dot(x_ref[...], w1_ref[...], preferred_element_type=jnp.float32) + b1_ref[...]
    o_ref[...] = jnp.dot(h, w2_ref[...], preferred_element_type=jnp.float32) + b2_ref[...]


def double_dense(x, w1, b1, w2, b2, *, tile_m=512):
    M, K1 = x.shape
    N1 = w1.shape[1]
    N2 = w2.shape[1]
    tm, Mp = _choose_row_tile(M, tile_m)
    xp = x if Mp == M else jnp.pad(x, ((0, Mp - M), (0, 0)))
    out = pl.pallas_call(
        _double_dense_kernel,
        out_shape=jax.ShapeDtypeStruct((Mp, N2), jnp.float32),
        grid=(Mp // tm,),
        in_specs=[
            pl.BlockSpec((tm, K1), lambda i: (i, 0)),
            pl.BlockSpec((K1, N1), lambda i: (0, 0)),
            pl.BlockSpec((1, N1), lambda i: (0, 0)),
            pl.BlockSpec((N1, N2), lambda i: (0, 0)),
            pl.BlockSpec((1, N2), lambda i: (0, 0)),
        ],
        out_specs=pl.BlockSpec((tm, N2), lambda i: (i, 0)),
        compiler_params=pltpu.CompilerParams(dimension_semantics=("parallel",)),
    )(xp, w1, b1.reshape(1, N1), w2, b2.reshape(1, N2))
    return out if Mp == M else out[:M]


# ----------------------------------------------------------------------------
# Fused kernel: Dot_Graph_Construction + get_A2 + GraphConvolution (SHGCN1)
# One grid step handles G graphs (G * num_node rows of MXU work per step).
# ----------------------------------------------------------------------------
def _shgcn_kernel(x_ref, wcat_ref, pA_ref, pA2_ref, pmlp_ref, attvec_ref, o_ref):
    xg = x_ref[...]                                  # (G, N, Fin) f32
    G, N, Fin = xg.shape
    F = o_ref.shape[2]                               # out_features
    H = pA_ref.shape[1] // 2                         # attention hidden

    # --- Dot_Graph_Construction ---------------------------------------------
    # TODO(synk): Dot_Graph_Construction definition not provided in the source;
    # this is the standard dot-product graph construction used with this model:
    # Adj = softmax(leaky_relu(X X^T - 1e8*I)) + I
    sim = jnp.einsum('gnf,gmf->gnm', xg, xg, preferred_element_type=jnp.float32)
    r = lax.broadcasted_iota(jnp.int32, (N, N), 0)
    c = lax.broadcasted_iota(jnp.int32, (N, N), 1)
    eye = (r == c).astype(jnp.float32)               # (N, N), built once per step
    sim = sim - 1e8 * eye
    sim = jnp.where(sim > 0, sim, 0.01 * sim)        # leaky_relu
    sim = sim - jnp.max(sim, axis=-1, keepdims=True)
    e = jnp.exp(sim)
    inv_row = pl.reciprocal(jnp.sum(e, axis=-1, keepdims=True), approx=True)
    adj = e * inv_row + eye                          # Adj_input  (G, N, N)
    adj2 = jnp.einsum('gnm,gmk->gnk', adj, adj,
                      preferred_element_type=jnp.float32)          # get_A2

    # --- GraphConvolution: one wide matmul for the 3 branch projections -----
    xw = jnp.dot(xg.reshape(G * N, Fin), wcat_ref[...],
                 preferred_element_type=jnp.float32).reshape(G, N, 3 * F)
    xwA, xwA2, xwmlp = xw[:, :, :F], xw[:, :, F:2 * F], xw[:, :, 2 * F:]

    out_A = jnp.maximum(
        jnp.einsum('gnm,gmf->gnf', adj, xwA, preferred_element_type=jnp.float32), 0.0)
    out_A2 = jnp.maximum(
        jnp.einsum('gnm,gmf->gnf', adj2, xwA2, preferred_element_type=jnp.float32), 0.0)
    out_mlp = jnp.maximum(xwmlp, 0.0)

    # --- attention: one (G*N, F) @ (F, 2H) matmul per branch ----------------
    prA = jnp.dot(out_A.reshape(G * N, F), pA_ref[...],
                  preferred_element_type=jnp.float32).reshape(G, N, 2 * H)
    prA2 = jnp.dot(out_A2.reshape(G * N, F), pA2_ref[...],
                   preferred_element_type=jnp.float32).reshape(G, N, 2 * H)
    prmlp = jnp.dot(out_mlp.reshape(G * N, F), pmlp_ref[...],
                    preferred_element_type=jnp.float32).reshape(G, N, 2 * H)

    k0 = jnp.mean(prA[:, :, :H], axis=1, keepdims=True)     # (G, 1, H)
    k1 = jnp.mean(prA2[:, :, :H], axis=1, keepdims=True)
    k2 = jnp.mean(prmlp[:, :, :H], axis=1, keepdims=True)

    # (out @ att_vec_*) @ k  ==  sum((out @ att_vec_*) * k, -1)
    a0 = jnp.sum(prA[:, :, H:] * k2, axis=-1, keepdims=True)     # (G, N, 1)
    a1 = jnp.sum(prA2[:, :, H:] * k0, axis=-1, keepdims=True)
    a2 = jnp.sum(prmlp[:, :, H:] * k1, axis=-1, keepdims=True)

    s0 = jax.nn.sigmoid(a0)
    s1 = jax.nn.sigmoid(a1)
    s2 = jax.nn.sigmoid(a2)

    # sigmoid(cat) @ att_vec (3x3) / T, softmax over the 3 branches.
    # att_vec lives in SMEM; expand the tiny 3x3 matmul into scalar FMAs.
    inv_T = 1.0 / 3.0
    l0 = (s0 * attvec_ref[0, 0] + s1 * attvec_ref[1, 0] + s2 * attvec_ref[2, 0]) * inv_T
    l1 = (s0 * attvec_ref[0, 1] + s1 * attvec_ref[1, 1] + s2 * attvec_ref[2, 1]) * inv_T
    l2 = (s0 * attvec_ref[0, 2] + s1 * attvec_ref[1, 2] + s2 * attvec_ref[2, 2]) * inv_T
    m = jnp.maximum(l0, jnp.maximum(l1, l2))
    e0 = jnp.exp(l0 - m)
    e1 = jnp.exp(l1 - m)
    e2 = jnp.exp(l2 - m)
    inv = pl.reciprocal(e0 + e1 + e2, approx=True)

    o_ref[...] = 3.0 * ((e0 * out_A + e1 * out_A2 + e2 * out_mlp) * inv)


def shgcn_forward(x, p, *, graphs_per_block=16):
    """x: (B, N, Fin) -> (B, N, Fout). One grid step per G graphs."""
    B, N, Fin = x.shape
    Fout = p["weight_A"].shape[1]
    H = p["W_k0"].shape[1]

    # Host-side weight concatenation (one wide matmul per projection group).
    w_cat = jnp.concatenate([p["weight_A"], p["weight_A2"], p["weight_mlp"]], axis=1)
    p_A = jnp.concatenate([p["W_k0"], p["att_vec_A"]], axis=1)      # (Fout, 2H)
    p_A2 = jnp.concatenate([p["W_k1"], p["att_vec_A2"]], axis=1)
    p_mlp = jnp.concatenate([p["W_k2"], p["att_vec_mlp"]], axis=1)

    # G graphs per block; keep >= 2 grid steps when B >= 2 (v7x has 2 TensorCores),
    # and keep blocks modest for v7x's smaller scoped VMEM.
    G = max(1, min(graphs_per_block, pl.cdiv(B, 2))) if B > 1 else 1
    num_blocks = pl.cdiv(B, G)
    Bp = num_blocks * G
    xp = x if Bp == B else jnp.pad(x, ((0, Bp - B), (0, 0), (0, 0)))

    def full(shape):
        return pl.BlockSpec(shape, lambda b: (0, 0))

    out = pl.pallas_call(
        _shgcn_kernel,
        out_shape=jax.ShapeDtypeStruct((Bp, N, Fout), jnp.float32),
        grid=(num_blocks,),
        in_specs=[
            pl.BlockSpec((G, N, Fin), lambda b: (b, 0, 0)),
            full((Fin, 3 * Fout)),
            full((Fout, 2 * H)), full((Fout, 2 * H)), full((Fout, 2 * H)),
            pl.BlockSpec(memory_space=pltpu.MemorySpace.SMEM),     # att_vec (3,3)
        ],
        out_specs=pl.BlockSpec((G, N, Fout), lambda b: (b, 0, 0)),
        compiler_params=pltpu.CompilerParams(dimension_semantics=("parallel",)),
    )(xp, w_cat, p_A, p_A2, p_mlp, p["att_vec"])
    return out if Bp == B else out[:B]


# ----------------------------------------------------------------------------
# Base_model forward (glue in plain JAX, compute in Pallas kernels above)
# ----------------------------------------------------------------------------
def base_model_forward(X, params, *, hidden, outdim):
    bs, tlen, num_node, dim = X.shape
    x = jnp.transpose(X, (0, 2, 1, 3))                     # [bs, node, tlen, dim]
    x = x.reshape(bs * num_node, tlen, dim)

    # nonlin_map: Linear(dim -> dim), then temporal projection (dim -> hidden),
    # fused into a single Pallas call (intermediate never touches HBM).
    # TODO(synk): Feature_extractor_1DCNN_tiny definition not provided; substituted a
    # per-timestep Linear(dim -> hidden) so convo_time_length == time_denpen_len.
    td = double_dense(x.reshape(-1, dim),
                      params["W_nonlin"], params["b_nonlin"],
                      params["W_td"], params["b_td"])
    td = td.reshape(bs * num_node, tlen, hidden)

    # TODO(synk): Modern (Time_Preprocessing2) definition not provided; identity.
    gc_in = td.reshape(bs, -1, num_node, hidden)           # same reshape semantics as torch
    gc_in = gc_in.reshape(-1, num_node, hidden)            # (bs*tlen, node, hidden)

    # Dot_Graph_Construction + get_A2 + SHGCN1 (GraphConvolution), fused in Pallas.
    gc_out = shgcn_forward(gc_in, params["gcn"])           # (bs*tlen, node, outdim)

    gc_out = gc_out.reshape(bs, -1, num_node, outdim)
    logits_input = gc_out.reshape(bs, -1)
    logits = dense(logits_input, params["W_logits"], params["b_logits"])
    return logits, gc_out


# ----------------------------------------------------------------------------
if __name__ == "__main__":
    # configs (small, consistent with the module): SHGCN1 = GraphConvolution(64, 128, 64)
    bs, tlen, num_node, window = 2, 2, 8, 16
    hidden = 64        # configs.hidden_channels  (SHGCN1 in_features)
    outdim = 128       # configs.final_out_channels (SHGCN1 out_features)
    att_hidden = 64    # GraphConvolution dim
    num_classes = 4
    time_length = tlen

    key = jax.random.PRNGKey(0)
    keys = jax.random.split(key, 17)

    def unif(k, shape, bound):
        return jax.random.uniform(k, shape, jnp.float32, -bound, bound)

    b_lin = 1.0 / math.sqrt(window)
    stdv = 1.0 / math.sqrt(outdim)
    std_att = 1.0 / math.sqrt(att_hidden)
    std_k = 1.0 / math.sqrt(att_hidden)
    std_av = 1.0 / math.sqrt(3.0)
    logits_in = time_length * outdim * num_node
    b_log = 1.0 / math.sqrt(logits_in)

    params = {
        "W_nonlin": unif(keys[0], (window, window), b_lin),
        "b_nonlin": unif(keys[1], (window,), b_lin),
        "W_td": unif(keys[2], (window, hidden), b_lin),
        "b_td": unif(keys[3], (hidden,), b_lin),
        "gcn": {
            "weight_A": unif(keys[4], (hidden, outdim), stdv),
            "weight_A2": unif(keys[5], (hidden, outdim), stdv),
            "weight_mlp": unif(keys[6], (hidden, outdim), stdv),
            "W_k0": unif(keys[7], (outdim, att_hidden), std_k),
            "W_k1": unif(keys[8], (outdim, att_hidden), std_k),
            "W_k2": unif(keys[9], (outdim, att_hidden), std_k),
            "att_vec_A": unif(keys[10], (outdim, att_hidden), std_att),
            "att_vec_A2": unif(keys[11], (outdim, att_hidden), std_att),
            "att_vec_mlp": unif(keys[12], (outdim, att_hidden), std_att),
            "att_vec": unif(keys[13], (3, 3), std_av),
        },
        "W_logits": unif(keys[14], (logits_in, num_classes), b_log),
        "b_logits": unif(keys[15], (num_classes,), b_log),
    }

    X = jax.random.normal(keys[16], (bs, tlen, num_node, window), jnp.float32)

    logits, gc_out = base_model_forward(X, params, hidden=hidden, outdim=outdim)
    jax.block_until_ready((logits, gc_out))

    assert logits.shape == (bs, num_classes)
    assert gc_out.shape == (bs, time_length, num_node, outdim)
    assert bool(jnp.all(jnp.isfinite(logits)))
    assert bool(jnp.all(jnp.isfinite(gc_out)))
    print("KERNEL_OK")
</pallas_src>

<mosaic_0001>
module attributes {stable_mosaic.version = 11 : i64} {
  func.func @_double_dense_kernel(%arg0: i32, %arg1: memref<32x16xf32, #tpu.memory_space<vmem>>, %arg2: memref<16x16xf32, #tpu.memory_space<vmem>>, %arg3: memref<1x16xf32, #tpu.memory_space<vmem>>, %arg4: memref<16x64xf32, #tpu.memory_space<vmem>>, %arg5: memref<1x64xf32, #tpu.memory_space<vmem>>, %arg6: memref<32x64xf32, #tpu.memory_space<vmem>>) attributes {dimension_semantics = [#tpu.dimension_semantics<parallel>], iteration_bounds = array<i64: 1>, scalar_prefetch = 0 : i64, scratch_operands = 0 : i64, tpu.core_type = #tpu.core_type<tc>, window_params = [{transform_indices = @transform_0, window_bounds = array<i64: 32, 16>}, {pipeline_mode = #tpu.pipeline_mode<synchronous>, transform_indices = @transform_1, window_bounds = array<i64: 16, 16>}, {pipeline_mode = #tpu.pipeline_mode<synchronous>, transform_indices = @transform_2, window_bounds = array<i64: 1, 16>}, {pipeline_mode = #tpu.pipeline_mode<synchronous>, transform_indices = @transform_3, window_bounds = array<i64: 16, 64>}, {pipeline_mode = #tpu.pipeline_mode<synchronous>, transform_indices = @transform_4, window_bounds = array<i64: 1, 64>}, {transform_indices = @transform_5, window_bounds = array<i64: 32, 64>}]} {
    %c0 = arith.constant 0 : index
    %c0_0 = arith.constant 0 : index
    %0 = vector.load %arg1[%c0, %c0_0] : memref<32x16xf32, #tpu.memory_space<vmem>>, vector<32x16xf32>
    %c0_1 = arith.constant 0 : index
    %c0_2 = arith.constant 0 : index
    %1 = vector.load %arg2[%c0_1, %c0_2] : memref<16x16xf32, #tpu.memory_space<vmem>>, vector<16x16xf32>
    %cst = arith.constant dense<0.000000e+00> : vector<32x16xf32>
    %2 = tpu.matmul %0, %1, %cst {dimension_numbers = #tpu.dot_dimension_numbers<[1], [0], [0], [1], [0, 0, 1, 1], [], []>} : vector<32x16xf32>, vector<16x16xf32>, vector<32x16xf32> -> vector<32x16xf32>
    %c0_3 = arith.constant 0 : index
    %c0_4 = arith.constant 0 : index
    %3 = vector.load %arg3[%c0_3, %c0_4] : memref<1x16xf32, #tpu.memory_space<vmem>>, vector<1x16xf32>
    %4 = vector.broadcast %3 : vector<1x16xf32> to vector<32x16xf32>
    %5 = arith.addf %2, %4 : vector<32x16xf32>
    %c0_5 = arith.constant 0 : index
    %c0_6 = arith.constant 0 : index
    %6 = vector.load %arg4[%c0_5, %c0_6] : memref<16x64xf32, #tpu.memory_space<vmem>>, vector<16x64xf32>
    %cst_7 = arith.constant dense<0.000000e+00> : vector<32x64xf32>
    %7 = tpu.matmul %5, %6, %cst_7 {dimension_numbers = #tpu.dot_dimension_numbers<[1], [0], [0], [1], [0, 0, 1, 1], [], []>} : vector<32x16xf32>, vector<16x64xf32>, vector<32x64xf32> -> vector<32x64xf32>
    %c0_8 = arith.constant 0 : index
    %c0_9 = arith.constant 0 : index
    %8 = vector.load %arg5[%c0_8, %c0_9] : memref<1x64xf32, #tpu.memory_space<vmem>>, vector<1x64xf32>
    %9 = vector.broadcast %8 : vector<1x64xf32> to vector<32x64xf32>
    %10 = arith.addf %7, %9 : vector<32x64xf32>
    %c0_10 = arith.constant 0 : index
    %c0_11 = arith.constant 0 : index
    %11 = vector.load %arg6[%c0_10, %c0_11] : memref<32x64xf32, #tpu.memory_space<vmem>>, vector<32x64xf32>
    tpu.vector_store %arg6[%c0_10, %c0_11], %10 {strides = array<i32>} : memref<32x64xf32, #tpu.memory_space<vmem>>, vector<32x64xf32>,
    return
  }
  func.func @transform_0(%arg0: i32) -> (i32, i32) {
    %c0_i32 = arith.constant 0 : i32
    %c0_i32_0 = arith.constant 0 : i32
    return %arg0, %c0_i32 : i32, i32
  }
  func.func @transform_1(%arg0: i32) -> (i32, i32) {
    %c0_i32 = arith.constant 0 : i32
    %c0_i32_0 = arith.constant 0 : i32
    %c0_i32_1 = arith.constant 0 : i32
    return %c0_i32, %c0_i32_0 : i32, i32
  }
  func.func @transform_2(%arg0: i32) -> (i32, i32) {
    %c0_i32 = arith.constant 0 : i32
    %c0_i32_0 = arith.constant 0 : i32
    %c0_i32_1 = arith.constant 0 : i32
    return %c0_i32, %c0_i32_0 : i32, i32
  }
  func.func @transform_3(%arg0: i32) -> (i32, i32) {
    %c0_i32 = arith.constant 0 : i32
    %c0_i32_0 = arith.constant 0 : i32
    %c0_i32_1 = arith.constant 0 : i32
    return %c0_i32, %c0_i32_0 : i32, i32
  }
  func.func @transform_4(%arg0: i32) -> (i32, i32) {
    %c0_i32 = arith.constant 0 : i32
    %c0_i32_0 = arith.constant 0 : i32
    %c0_i32_1 = arith.constant 0 : i32
    return %c0_i32, %c0_i32_0 : i32, i32
  }
  func.func @transform_5(%arg0: i32) -> (i32, i32) {
    %c0_i32 = arith.constant 0 : i32
    %c0_i32_0 = arith.constant 0 : i32
    return %arg0, %c0_i32 : i32, i32
  }
}

</mosaic_0001>

<llo_original>
// kernel: tpu_custom_call.1
$region0: #{tpu_custom_call.1}
  #allocation0 [shape = 'u32[]', space=smem, size = 0x4, offset = 0x4, fixed_abs, tag = 'smem constant byte address 0x4 - core index']
  #allocation1 [shape = 'u32[144,128]{1,0:T(1,128)}', space=vmem, size = 0x12000, scoped, tag = 'internal scratch']
  %s0 = inlined_call_operand.vmem [shape: f32[32,16], index: 0, kind: input, shape index: {}]
  %s1 = inlined_call_operand.vmem [shape: f32[16,16], index: 1, kind: input, shape index: {}]
  %s2 = inlined_call_operand.vmem [shape: f32[1,16], index: 2, kind: input, shape index: {}]
  %s3 = inlined_call_operand.vmem [shape: f32[16,64], index: 3, kind: input, shape index: {}]
  %s4 = inlined_call_operand.vmem [shape: f32[1,64], index: 4, kind: input, shape index: {}]
  %s5 = inlined_call_operand.hbm [shape: f32[32,64], index: 5, kind: output, shape index: {}]
  %s6 = sld [smem:[#allocation0]]
  $region30: #{tpu_custom_call.1} parent=0
    _
  %s8 = ssub.s32 1, %s6
  %s9 = scalar_select 0, %s8, %s6
  $region1: #{tpu_custom_call.1} parent=0
    #allocation2 [shape = 'u8[16384]{0}', space=vmem, size = 0x4000, scoped, tag = 'output window, operand 0, single buffered']
    #allocation3 [shape = 's32[1]{0}', space=sflag, size = 0x4, scoped, tag = 'scoped memory for tpu_custom_call.1']
    %10 = vsyncpa [#allocation3], 0
    // Predicated region
    $region2: #{tpu_custom_call.1} parent=1 // pred_check
      _
    $region3: #{tpu_custom_call.1} parent=1 // pred_check_branch
      %12 = sbr.rel (0) target = $region5
    $region4: #{tpu_custom_call.1} parent=1 // pred_region
      _
    $region5: #{tpu_custom_call.1} parent=1 // pred_fallthru
      _
    // Predicated region
    $region6: #{tpu_custom_call.1} parent=1 // pred_check
      _
    $region7: #{tpu_custom_call.1} parent=1 // pred_check_branch
      %14 = sbr.rel (0) target = $region9
    $region8: #{tpu_custom_call.1} parent=1 // pred_region
      _
    $region9: #{tpu_custom_call.1} parent=1 // pred_fallthru
      _
    // Predicated region
    $region10: #{tpu_custom_call.1} parent=1 // pred_check
      _
    $region11: #{tpu_custom_call.1} parent=1 // pred_check_branch
      %16 = sbr.rel (0) target = $region13
    $region12: #{tpu_custom_call.1} parent=1 // pred_region
      _
    $region13: #{tpu_custom_call.1} parent=1 // pred_fallthru
      _
    // Predicated region
    $region14: #{tpu_custom_call.1} parent=1 // pred_check
      _
    $region15: #{tpu_custom_call.1} parent=1 // pred_check_branch
      %18 = sbr.rel (0) target = $region17
    $region16: #{tpu_custom_call.1} parent=1 // pred_region
      _
    $region17: #{tpu_custom_call.1} parent=1 // pred_fallthru
      _
    // Predicated region
    $region18: #{tpu_custom_call.1} parent=1 // pred_check
      _
    $region19: #{tpu_custom_call.1} parent=1 // pred_check_branch
      %20 = sbr.rel (0) target = $region21
    $region20: #{tpu_custom_call.1} parent=1 // pred_region
      _
    $region21: #{tpu_custom_call.1} parent=1 // pred_fallthru
      _
    %v21 = vld [vmem:[%s0] sm:$0xff]
    %v22 = vld [vmem:[%s0 + $0x8] sm:$0xff]
    %v23 = vld [vmem:[%s0 + $0x10] sm:$0xff]
    %v24 = vld [vmem:[%s0 + $0x18] sm:$0xff]
    %v25 = vld [vmem:[%s1] sm:$0xff]
    %v26 = vld [vmem:[%s1 + $0x8] sm:$0xff]
    %v27 = vld [vmem:[%s2] sm:$0x1]
    %v29 = vlaneseq
    %v30 = vshrl.u32 %v29, 7
    %v31 = vsub.s32 0, %v30
    %v32 = vrot.slane %v27, %v31
    %vm34 = vcmask 130048
    %v36 = vsel %vm34, %v21, 0
    %v39 = vsel %vm34, %v22, 0
    %v42 = vsel %vm34, %v23, 0
    %v45 = vsel %vm34, %v24, 0
    %47 = vmatprep.subr.mxu0 0.0
    %48 = vmatpush1.msra.mxu0 0.0
    %49 = vmatprep.subr.mxu0 0.0
    %50 = vmatpush1.msra.mxu0 0.0
    %51 = vmatprep.subr.mxu0 0.0
    %52 = vmatpush1.msra.mxu0 0.0
    %53 = vmatprep.subr.mxu0 0.0
    %54 = vmatpush1.msra.mxu0 0.0
    %55 = vmatprep.subr.mxu0 0.0
    %56 = vmatpush1.msra.mxu0 0.0
    %57 = vmatprep.subr.mxu0 0.0
    %58 = vmatpush1.msra.mxu0 0.0
    %59 = vmatprep.subr.mxu0 0.0
    %60 = vmatpush1.msra.mxu0 0.0
    %61 = vmatprep.subr.mxu0 0.0
    %62 = vmatpush1.msra.mxu0 0.0
    %63 = vmatprep.subr.mxu0 0.0
    %64 = vmatpush1.msra.mxu0 0.0
    %65 = vmatprep.subr.mxu0 0.0
    %66 = vmatpush1.msra.mxu0 0.0
    %67 = vmatprep.subr.mxu0 0.0
    %68 = vmatpush1.msra.mxu0 0.0
    %69 = vmatprep.subr.mxu0 0.0
    %70 = vmatpush1.msra.mxu0 0.0
    %71 = vmatprep.subr.mxu0 0.0
    %72 = vmatpush1.msra.mxu0 0.0
    %73 = vmatprep.subr.mxu0 0.0
    %74 = vmatpush1.msra.mxu0 0.0
    %75 = vmatprep.subr.mxu0 0.0
    %76 = vmatpush1.msra.mxu0 %v26
    %77 = vmatprep.subr.mxu0 0.0
    %78 = vmatpush1.msra.mxu0 %v25
    %79 = vmatprep.subr.mxu0 0.0
    %80 = vmatpush2.msra.mxu0 0.0
    %81 = vmatprep.subr.mxu0 0.0
    %82 = vmatpush2.msra.mxu0 0.0
    %83 = vmatprep.subr.mxu0 0.0
    %84 = vmatpush2.msra.mxu0 0.0
    %85 = vmatprep.subr.mxu0 0.0
    %86 = vmatpush2.msra.mxu0 0.0
    %87 = vmatprep.subr.mxu0 0.0
    %88 = vmatpush2.msra.mxu0 0.0
    %89 = vmatprep.subr.mxu0 0.0
    %90 = vmatpush2.msra.mxu0 0.0
    %91 = vmatprep.subr.mxu0 0.0
    %92 = vmatpush2.msra.mxu0 0.0
    %93 = vmatprep.subr.mxu0 0.0
    %94 = vmatpush2.msra.mxu0 0.0
    %95 = vmatprep.subr.mxu0 0.0
    %96 = vmatpush2.msra.mxu0 0.0
    %97 = vmatprep.subr.mxu0 0.0
    %98 = vmatpush2.msra.mxu0 0.0
    %99 = vmatprep.subr.mxu0 0.0
    %100 = vmatpush2.msra.mxu0 0.0
    %101 = vmatprep.subr.mxu0 0.0
    %102 = vmatpush2.msra.mxu0 0.0
    %103 = vmatprep.subr.mxu0 0.0
    %104 = vmatpush2.msra.mxu0 0.0
    %105 = vmatprep.subr.mxu0 0.0
    %106 = vmatpush2.msra.mxu0 0.0
    %107 = vmatprep.subr.mxu0 0.0
    %108 = vmatpush2.msra.mxu0 0.0
    %109 = vmatprep.subr.mxu0 0.0
    %110 = vmatpush2.msra.mxu0 0.0
    %111 = vmatprep.mubr.f32.mxu0 0.0
    %112 = vmatmul.mubr.f32.gmra.mxu0 %v36
    %v113 = vpop.f32.mrf.mxu0
    %v114 = vadd.f32 %v32, %v113
    %v115 = vpop.f32.mrf.mxu0
    %116 = vmatprep.mubr.f32.mxu0 0.0
    %117 = vmatmul.mubr.f32.gmra.mxu0 %v39
    %v118 = vpop.f32.mrf.mxu0
    %v119 = vadd.f32 %v32, %v118
    %v120 = vpop.f32.mrf.mxu0
    %121 = vmatprep.mubr.f32.mxu0 0.0
    %122 = vmatmul.mubr.f32.gmra.mxu0 %v42
    %v123 = vpop.f32.mrf.mxu0
    %v124 = vadd.f32 %v32, %v123
    %v125 = vpop.f32.mrf.mxu0
    %126 = vmatprep.mubr.f32.mxu0 0.0
    %127 = vmatmul.mubr.f32.gmra.mxu0 %v45
    %v128 = vpop.f32.mrf.mxu0
    %v129 = vadd.f32 %v32, %v128
    %v130 = vpop.f32.mrf.mxu0
    %131 = vdwg.mxu0
    %v132 = vld [vmem:[%s3] sm:$0xff]
    %v133 = vld [vmem:[%s3 + $0x8] sm:$0xff]
    %v134 = vld [vmem:[%s4] sm:$0x1]
    %v136 = vlaneseq
    %v137 = vshrl.u32 %v136, 7
    %v138 = vsub.s32 0, %v137
    %v139 = vrot.slane %v134, %v138
    %v142 = vsel %vm34, %v114, 0
    %v145 = vsel %vm34, %v119, 0
    %v148 = vsel %vm34, %v124, 0
    %v151 = vsel %vm34, %v129, 0
    %153 = vmatprep.subr.mxu0 0.0
    %154 = vmatpush1.msra.mxu0 0.0
    %155 = vmatprep.subr.mxu0 0.0
    %156 = vmatpush1.msra.mxu0 0.0
    %157 = vmatprep.subr.mxu0 0.0
    %158 = vmatpush1.msra.mxu0 0.0
    %159 = vmatprep.subr.mxu0 0.0
    %160 = vmatpush1.msra.mxu0 0.0
    %161 = vmatprep.subr.mxu0 0.0
    %162 = vmatpush1.msra.mxu0 0.0
    %163 = vmatprep.subr.mxu0 0.0
    %164 = vmatpush1.msra.mxu0 0.0
    %165 = vmatprep.subr.mxu0 0.0
    %166 = vmatpush1.msra.mxu0 0.0
    %167 = vmatprep.subr.mxu0 0.0
    %168 = vmatpush1.msra.mxu0 0.0
    %169 = vmatprep.subr.mxu0 0.0
    %170 = vmatpush1.msra.mxu0 0.0
    %171 = vmatprep.subr.mxu0 0.0
    %172 = vmatpush1.msra.mxu0 0.0
    %173 = vmatprep.subr.mxu0 0.0
    %174 = vmatpush1.msra.mxu0 0.0
    %175 = vmatprep.subr.mxu0 0.0
    %176 = vmatpush1.msra.mxu0 0.0
    %177 = vmatprep.subr.mxu0 0.0
    %178 = vmatpush1.msra.mxu0 0.0
    %179 = vmatprep.subr.mxu0 0.0
    %180 = vmatpush1.msra.mxu0 0.0
    %181 = vmatprep.subr.mxu0 0.0
    %182 = vmatpush1.msra.mxu0 %v133
    %183 = vmatprep.subr.mxu0 0.0
    %184 = vmatpush1.msra.mxu0 %v132
    %185 = vmatprep.subr.mxu0 0.0
    %186 = vmatpush2.msra.mxu0 0.0
    %187 = vmatprep.subr.mxu0 0.0
    %188 = vmatpush2.msra.mxu0 0.0
    %189 = vmatprep.subr.mxu0 0.0
    %190 = vmatpush2.msra.mxu0 0.0
    %191 = vmatprep.subr.mxu0 0.0
    %192 = vmatpush2.msra.mxu0 0.0
    %193 = vmatprep.subr.mxu0 0.0
    %194 = vmatpush2.msra.mxu0 0.0
    %195 = vmatprep.subr.mxu0 0.0
    %196 = vmatpush2.msra.mxu0 0.0
    %197 = vmatprep.subr.mxu0 0.0
    %198 = vmatpush2.msra.mxu0 0.0
    %199 = vmatprep.subr.mxu0 0.0
    %200 = vmatpush2.msra.mxu0 0.0
    %201 = vmatprep.subr.mxu0 0.0
    %202 = vmatpush2.msra.mxu0 0.0
    %203 = vmatprep.subr.mxu0 0.0
    %204 = vmatpush2.msra.mxu0 0.0
    %205 = vmatprep.subr.mxu0 0.0
    %206 = vmatpush2.msra.mxu0 0.0
    %207 = vmatprep.subr.mxu0 0.0
    %208 = vmatpush2.msra.mxu0 0.0
    %209 = vmatprep.subr.mxu0 0.0
    %210 = vmatpush2.msra.mxu0 0.0
    %211 = vmatprep.subr.mxu0 0.0
    %212 = vmatpush2.msra.mxu0 0.0
    %213 = vmatprep.subr.mxu0 0.0
    %214 = vmatpush2.msra.mxu0 0.0
    %215 = vmatprep.subr.mxu0 0.0
    %216 = vmatpush2.msra.mxu0 0.0
    %217 = vmatprep.mubr.f32.mxu0 0.0
    %218 = vmatmul.mubr.f32.gmra.mxu0 %v142
    %v219 = vpop.f32.mrf.mxu0
    %v220 = vadd.f32 %v139, %v219
    %v221 = vpop.f32.mrf.mxu0
    %222 = vmatprep.mubr.f32.mxu0 0.0
    %223 = vmatmul.mubr.f32.gmra.mxu0 %v145
    %v224 = vpop.f32.mrf.mxu0
    %v225 = vadd.f32 %v139, %v224
    %v226 = vpop.f32.mrf.mxu0
    %227 = vmatprep.mubr.f32.mxu0 0.0
    %228 = vmatmul.mubr.f32.gmra.mxu0 %v148
    %v229 = vpop.f32.mrf.mxu0
    %v230 = vadd.f32 %v139, %v229
    %v231 = vpop.f32.mrf.mxu0
    %232 = vmatprep.mubr.f32.mxu0 0.0
    %233 = vmatmul.mubr.f32.gmra.mxu0 %v151
    %v234 = vpop.f32.mrf.mxu0
    %v235 = vadd.f32 %v139, %v234
    %v236 = vpop.f32.mrf.mxu0
    %237 = vdwg.mxu0
    %vm238 = vcmask 523264
    %239 = vst.msk [vmem:[#allocation2] sm:$0xff] %vm238, %v220
    %240 = vst.msk [vmem:[#allocation2 + $0x8] sm:$0xff] %vm238, %v225
    %241 = vst.msk [vmem:[#allocation2 + $0x10] sm:$0xff] %vm238, %v230
    %242 = vst.msk [vmem:[#allocation2 + $0x18] sm:$0xff] %vm238, %v235
    // Predicated region
    $region22: #{tpu_custom_call.1} parent=1 // pred_check
      _
    $region23: #{tpu_custom_call.1} parent=1 // pred_check_branch
      %244 = sbr.rel (0) target = $region25
    $region24: #{tpu_custom_call.1} parent=1 // pred_region
      %s246 = ssub.s32 512, 512
      %247 = vsyncadd [#allocation3], %s246
      %s248 = sshll.u32 [#allocation2], 4
      %s249 = int_to_ptr.vmem [resolvable:$true] %s248
      %254 = dma.vmem_to_hbm [thread:$0]  %s249, 512, %s5, [#allocation3], 128, 128, 8
    $region25: #{tpu_custom_call.1} parent=1 // pred_fallthru
      _
    // Predicated region
    $region26: #{tpu_custom_call.1} parent=1 // pred_check
      _
    $region27: #{tpu_custom_call.1} parent=1 // pred_check_branch
      %256 = sbr.rel (0) target = $region29
    $region28: #{tpu_custom_call.1} parent=1 // pred_region
      %257 = dma.done [#allocation3], 512
    $region29: #{tpu_custom_call.1} parent=1 // pred_fallthru
      _
    %258 = vsyncpa [#allocation3], 1

</llo_original>
